<compile_context>
chip_gen: v6e
topology: v6e:2x2x1
jax: 0.10.0
libtpu: 0.0.40
codegen_flags: <defaults>
</compile_context>

<pallas_src>
import jax
import jax.numpy as jnp
from jax import lax
from jax.experimental import pallas as pl
from jax.experimental.pallas import tpu as pltpu

NEG_SLOPE = 0.01      # PyTorch F.leaky_relu default negative_slope
LANES = 128


def _leaky_relu(x):
    return jnp.where(x > 0, x, NEG_SLOPE * x)


def _round8(n):
    return -(-n // 8) * 8


# --------------------------------------------------------------------------- #
# One-time parameter packing: single lane-shared (rows, 128) f32 slab.
# --------------------------------------------------------------------------- #
def _pack_params(students, w5, w6, w1, b1, w2, b2, w3, b3, w4, b4):
    """Pack all tiny parameters into ONE (rows, 128) f32 slab.  Blocks sit side-by-side
    in lanes inside 8-row-aligned bands (each block only needs 1-32 lanes), so the slab
    is ~32 rows (16 KB) instead of one row-band per block.  Runs once at setup.
    Returns (slab, {name: (row, lane, nrows, ncols)})."""
    blocks = dict(students=students, w5=w5, w6=w6, w1=w1, w2=w2, w3=w3, w4=w4,
                  b1=b1, b2=b2, b3=b3, b4=b4)
    blocks = {k: jnp.asarray(v, jnp.float32) for k, v in blocks.items()}

    S, SDIM = blocks['students'].shape
    Q4, Q = blocks['w6'].shape
    assert SDIM <= 32 and 32 + Q <= 96, 'band-A lane layout overflow'
    assert Q4 <= 16 and 16 + blocks['w2'].shape[1] <= 128, 'band-B lane layout overflow'

    hA = _round8(max(S, Q4, blocks['w3'].shape[0]))      # band A: students | w6 | w3
    hB = _round8(max(SDIM, blocks['w2'].shape[0]))       # band B: w5 | w2
    rC = hA + hB                                         # band C: w1 | w4 ; biases below
    rb = rC + 4
    layout_rc = {
        'students': (0, 0), 'w6': (0, 32), 'w3': (0, 96),
        'w5': (hA, 0), 'w2': (hA, 16),
        'w1': (rC, 0), 'w4': (rC, 32),
        'b1': (rb, 0), 'b2': (rb + 1, 0), 'b3': (rb + 2, 0), 'b4': (rb + 3, 0),
    }
    rows = rC + 8
    slab = jnp.zeros((rows, LANES), jnp.float32)
    layout = {}
    for name, (r, c) in layout_rc.items():
        a = blocks[name]
        slab = slab.at[r:r + a.shape[0], c:c + a.shape[1]].set(a)
        layout[name] = (r, c, a.shape[0], a.shape[1])
    return slab, layout


# --------------------------------------------------------------------------- #
# Pallas kernel: the whole post-encoder forward pass (single invocation, no grid)
# --------------------------------------------------------------------------- #
def _make_kernel(layout, G, out_rows):
    def sl(ref, name):
        r, c, h, w = layout[name]
        return ref[r:r + h, c:c + w]

    def kernel(p_ref, cls_ref, lab_ref, o_ref):
        students = sl(p_ref, 'students')
        w5, w6 = sl(p_ref, 'w5'), sl(p_ref, 'w6')
        w1, w2 = sl(p_ref, 'w1'), sl(p_ref, 'w2')
        w3, w4 = sl(p_ref, 'w3'), sl(p_ref, 'w4')
        b1, b2 = sl(p_ref, 'b1'), sl(p_ref, 'b2')
        b3, b4 = sl(p_ref, 'b3'), sl(p_ref, 'b4')

        # ---- student MLP (shared across groups): leaky_relu(S@W5); leaky_relu(.@W6)
        h = _leaky_relu(jnp.dot(students, w5, preferred_element_type=jnp.float32))
        h = _leaky_relu(jnp.dot(h, w6, preferred_element_type=jnp.float32))      # (S, Q)

        # Contract on Q (== h @ cls_g.T): no host-side transpose of trans_cls needed.
        dn = (((1,), (1,)), ((), ()))
        sq_sum = None
        for g in range(G):                          # G is tiny & static -> unrolled
            cls_g = cls_ref[4 * g:4 * g + 4, :]                               # (4, Q)
            logit = lax.dot_general(h, cls_g, dn,
                                    preferred_element_type=jnp.float32)       # (S, 4)

            # ---- softmax within the 4-lane group: per-group max + exact divide
            m = jnp.max(logit, axis=1, keepdims=True)
            e = jnp.exp(logit - m)
            p = e / jnp.sum(e, axis=1, keepdims=True)                         # (S, 4)
            pm = jnp.mean(p, axis=0, keepdims=True)                           # (1, 4)

            # ---- entropy of the mean distribution
            ent = -jnp.sum(pm * jnp.log(jnp.maximum(pm, 1e-30)),
                           axis=1, keepdims=True)                             # (1, 1)

            # ---- 4-layer prediction head with the original small weights
            x = jnp.tanh(jnp.dot(pm, w1, preferred_element_type=jnp.float32) + b1)
            x = jnp.tanh(jnp.dot(x, w2, preferred_element_type=jnp.float32) + b2)
            x = jnp.tanh(jnp.dot(x, w3, preferred_element_type=jnp.float32) + b3)
            pred = jnp.dot(x, w4, preferred_element_type=jnp.float32) + b4    # (1, 1)

            # ---- per-group squared error against the SMEM label scalar
            d = pred - lab_ref[g]
            sq_sum = d * d if sq_sum is None else sq_sum + d * d

            # ---- packed output rows (every output element is written -> no zero init)
            o_ref[g:g + 1, :] = pm
            o_ref[G + g:G + g + 1, :] = jnp.broadcast_to(pred, (1, 4))
            o_ref[2 * G + g:2 * G + g + 1, :] = jnp.broadcast_to(ent, (1, 4))

        loss = sq_sum * (1.0 / G)                     # MSE (test=True path), (1, 1)
        o_ref[3 * G:out_rows, :] = jnp.broadcast_to(loss, (out_rows - 3 * G, 4))

    return kernel


# --------------------------------------------------------------------------- #
# Wrapper: pack params once, single pallas_call per batch, unpack tiny output.
# --------------------------------------------------------------------------- #
def make_head_forward(students, w5, w6, w1, b1, w2, b2, w3, b3, w4, b4, B):
    G = B // 4
    out_rows = _round8(3 * G + 1)
    p_slab, layout = _pack_params(students, w5, w6, w1, b1, w2, b2, w3, b3, w4, b4)
    kernel = _make_kernel(layout, G, out_rows)

    call = pl.pallas_call(
        kernel,
        out_shape=jax.ShapeDtypeStruct((out_rows, 4), jnp.float32),
        in_specs=[
            pl.BlockSpec(memory_space=pltpu.MemorySpace.VMEM),   # packed param slab
            pl.BlockSpec(memory_space=pltpu.MemorySpace.VMEM),   # trans_cls (B, Q)
            pl.BlockSpec(memory_space=pltpu.MemorySpace.SMEM),   # labels (G,) scalars
        ],
        out_specs=pl.BlockSpec(memory_space=pltpu.MemorySpace.VMEM),
    )

    @jax.jit
    def forward(trans_cls, labels):
        out = call(p_slab, trans_cls.astype(jnp.float32), labels.astype(jnp.float32))
        probs = out[0:G, :]                    # (G, 4) mean softmax probabilities
        pred = out[G:2 * G, 0:1]               # (G, 1) predictions
        ent = out[2 * G:3 * G, 0:1]            # (G, 1) entropy
        loss = out[3 * G:3 * G + 1, 0:1]       # (1, 1) MSE loss
        return pred, probs, ent, loss

    return forward


# --------------------------------------------------------------------------- #
# Glue (plain JAX)
# --------------------------------------------------------------------------- #
def synthetic_pooler(embedding, pooler_w, pooler_b, input_ids, attention_mask):
    # TODO(synk): stands in for the pretrained LongformerModel backbone.
    emb = embedding[input_ids]                                   # (B, T, H)
    mask = attention_mask[..., None].astype(jnp.float32)
    pooled = (emb * mask).sum(axis=1) / jnp.maximum(mask.sum(axis=1), 1.0)
    return jnp.tanh(pooled @ pooler_w + pooler_b)                # (B, q_dim)


def reference_forward(students, w5, w6, cls, w1, b1, w2, b2, w3, b3, w4, b4, labels2d):
    h = _leaky_relu(students @ w5)
    h = _leaky_relu(h @ w6)
    logits = h @ cls.T
    S, B = logits.shape
    p = jax.nn.softmax(logits.reshape(-1, 4), axis=1).reshape(S, B)
    p = p.mean(axis=0).reshape(-1, 4)
    x = jnp.tanh(p @ w1 + b1)
    x = jnp.tanh(x @ w2 + b2)
    x = jnp.tanh(x @ w3 + b3)
    pred = x @ w4 + b4
    entropy = -jnp.sum(p * jnp.log(p), axis=1, keepdims=True)
    loss = jnp.mean((pred - labels2d) ** 2, keepdims=True)
    return pred, p, entropy, loss


if __name__ == "__main__":
    # Small, shape-consistent configuration.
    B, T, VOCAB, HID = 8, 8, 64, 32           # batch (multiple of 4), seq, vocab, hidden
    Q_DIM, S_DIM, N_STUD = 32, 16, 8          # q_dim, s_dim, num_train_students
    G = B // 4

    key = jax.random.PRNGKey(0)
    ks = jax.random.split(key, 20)

    # Backbone stand-in parameters.
    embedding = jax.random.normal(ks[0], (VOCAB, HID), jnp.float32) * 0.1
    pooler_w = jax.random.normal(ks[1], (HID, Q_DIM), jnp.float32) * 0.1
    pooler_b = jax.random.normal(ks[2], (1, Q_DIM), jnp.float32) * 0.01

    # bilinear_5 / bilinear_6 (xavier_normal)
    std5 = (2.0 / (S_DIM + Q_DIM // 4)) ** 0.5
    std6 = (2.0 / (Q_DIM // 4 + Q_DIM)) ** 0.5
    w5 = jax.random.normal(ks[3], (S_DIM, Q_DIM // 4), jnp.float32) * std5
    w6 = jax.random.normal(ks[4], (Q_DIM // 4, Q_DIM), jnp.float32) * std6

    # Prediction head (stored as [in, out] so the kernel computes x @ W + b).
    w1 = jax.random.normal(ks[5], (4, 16), jnp.float32) * 0.3
    b1 = jax.random.normal(ks[6], (1, 16), jnp.float32) * 0.05
    w2 = jax.random.normal(ks[7], (16, 8), jnp.float32) * 0.3
    b2 = jax.random.normal(ks[8], (1, 8), jnp.float32) * 0.05
    w3 = jax.random.normal(ks[9], (8, 4), jnp.float32) * 0.3
    b3 = jax.random.normal(ks[10], (1, 4), jnp.float32) * 0.05
    w4 = jax.random.normal(ks[11], (4, 1), jnp.float32) * 0.3
    b4 = jax.random.normal(ks[12], (1, 1), jnp.float32) * 0.05

    # students ~ N(0, I)
    students = jax.random.normal(ks[13], (N_STUD, S_DIM), jnp.float32)

    # Batch inputs.
    input_ids = jax.random.randint(ks[14], (B, T), 0, VOCAB)
    attention_mask = jnp.ones((B, T), jnp.int32)
    labels = jax.random.normal(ks[15], (G,), jnp.float32)
    labels2d = labels.reshape(G, 1)

    # "Encoder" pooler output (glue, plain JAX).
    trans_cls = synthetic_pooler(embedding, pooler_w, pooler_b, input_ids, attention_mask)

    # Pallas kernel forward (params packed once; 3 tiny input DMAs, 1 tiny writeback).
    head_forward = make_head_forward(students, w5, w6, w1, b1, w2, b2, w3, b3, w4, b4, B)
    pred2d, probs, ent2d, loss = head_forward(trans_cls, labels)
    jax.block_until_ready((pred2d, probs, ent2d, loss))

    # Verify against a pure-JAX reference (exact softmax divide -> tight tolerances).
    r_pred, r_probs, r_ent, r_loss = reference_forward(
        students, w5, w6, trans_cls, w1, b1, w2, b2, w3, b3, w4, b4, labels2d)
    assert jnp.allclose(pred2d, r_pred, rtol=2e-3, atol=2e-3)
    assert jnp.allclose(probs, r_probs, rtol=2e-3, atol=2e-3)
    assert jnp.allclose(ent2d, r_ent, rtol=2e-3, atol=2e-3)
    assert jnp.allclose(loss, r_loss, rtol=2e-3, atol=2e-3)

    print("KERNEL_OK")
</pallas_src>

<mosaic_0001>
module attributes {stable_mosaic.version = 11 : i64} {
  func.func @kernel(%arg0: memref<32x128xf32, #tpu.memory_space<vmem>>, %arg1: memref<8x32xf32, #tpu.memory_space<vmem>>, %arg2: memref<2xf32, #tpu.memory_space<smem>>, %arg3: memref<8x4xf32, #tpu.memory_space<vmem>>) attributes {dimension_semantics = [], scalar_prefetch = 0 : i64, scratch_operands = 0 : i64, tpu.core_type = #tpu.core_type<tc>} {
    %c0 = arith.constant 0 : index
    %c0_0 = arith.constant 0 : index
    %0 = vector.load %arg0[%c0, %c0_0] : memref<32x128xf32, #tpu.memory_space<vmem>>, vector<8x16xf32>
    %c8 = arith.constant 8 : index
    %c0_1 = arith.constant 0 : index
    %1 = vector.load %arg0[%c8, %c0_1] : memref<32x128xf32, #tpu.memory_space<vmem>>, vector<16x8xf32>
    %c0_2 = arith.constant 0 : index
    %c32 = arith.constant 32 : index
    %2 = vector.load %arg0[%c0_2, %c32] : memref<32x128xf32, #tpu.memory_space<vmem>>, vector<8x32xf32>
    %c24 = arith.constant 24 : index
    %c0_3 = arith.constant 0 : index
    %3 = vector.load %arg0[%c24, %c0_3] : memref<32x128xf32, #tpu.memory_space<vmem>>, vector<4x16xf32>
    %c8_4 = arith.constant 8 : index
    %c16 = arith.constant 16 : index
    %4 = vector.load %arg0[%c8_4, %c16] : memref<32x128xf32, #tpu.memory_space<vmem>>, vector<16x8xf32>
    %c0_5 = arith.constant 0 : index
    %c96 = arith.constant 96 : index
    %5 = vector.load %arg0[%c0_5, %c96] : memref<32x128xf32, #tpu.memory_space<vmem>>, vector<8x4xf32>
    %c24_6 = arith.constant 24 : index
    %c32_7 = arith.constant 32 : index
    %6 = vector.load %arg0[%c24_6, %c32_7] : memref<32x128xf32, #tpu.memory_space<vmem>>, vector<4x1xf32>
    %c28 = arith.constant 28 : index
    %c0_8 = arith.constant 0 : index
    %7 = vector.load %arg0[%c28, %c0_8] : memref<32x128xf32, #tpu.memory_space<vmem>>, vector<1x16xf32>
    %c29 = arith.constant 29 : index
    %c0_9 = arith.constant 0 : index
    %8 = vector.load %arg0[%c29, %c0_9] : memref<32x128xf32, #tpu.memory_space<vmem>>, vector<1x8xf32>
    %c30 = arith.constant 30 : index
    %c0_10 = arith.constant 0 : index
    %9 = vector.load %arg0[%c30, %c0_10] : memref<32x128xf32, #tpu.memory_space<vmem>>, vector<1x4xf32>
    %c31 = arith.constant 31 : index
    %c0_11 = arith.constant 0 : index
    %10 = vector.load %arg0[%c31, %c0_11] : memref<32x128xf32, #tpu.memory_space<vmem>>, vector<1x1xf32>
    %cst = arith.constant dense<0.000000e+00> : vector<8x8xf32>
    %11 = tpu.matmul %0, %1, %cst {dimension_numbers = #tpu.dot_dimension_numbers<[1], [0], [0], [1], [0, 0, 1, 1], [], []>} : vector<8x16xf32>, vector<16x8xf32>, vector<8x8xf32> -> vector<8x8xf32>
    %cst_12 = arith.constant 0.000000e+00 : f32
    %12 = vector.broadcast %cst_12 : f32 to vector<8x8xf32>
    %13 = arith.cmpf ogt, %11, %12 : vector<8x8xf32>
    %cst_13 = arith.constant 0.00999999977 : f32
    %14 = vector.broadcast %cst_13 : f32 to vector<8x8xf32>
    %15 = arith.mulf %14, %11 : vector<8x8xf32>
    %16 = arith.select %13, %11, %15 : vector<8x8xi1>, vector<8x8xf32>
    %cst_14 = arith.constant dense<0.000000e+00> : vector<8x32xf32>
    %17 = tpu.matmul %16, %2, %cst_14 {dimension_numbers = #tpu.dot_dimension_numbers<[1], [0], [0], [1], [0, 0, 1, 1], [], []>} : vector<8x8xf32>, vector<8x32xf32>, vector<8x32xf32> -> vector<8x32xf32>
    %cst_15 = arith.constant 0.000000e+00 : f32
    %18 = vector.broadcast %cst_15 : f32 to vector<8x32xf32>
    %19 = arith.cmpf ogt, %17, %18 : vector<8x32xf32>
    %cst_16 = arith.constant 0.00999999977 : f32
    %20 = vector.broadcast %cst_16 : f32 to vector<8x32xf32>
    %21 = arith.mulf %20, %17 : vector<8x32xf32>
    %22 = arith.select %19, %17, %21 : vector<8x32xi1>, vector<8x32xf32>
    %c0_17 = arith.constant 0 : index
    %c0_18 = arith.constant 0 : index
    %23 = vector.load %arg1[%c0_17, %c0_18] : memref<8x32xf32, #tpu.memory_space<vmem>>, vector<4x32xf32>
    %cst_19 = arith.constant dense<0.000000e+00> : vector<8x4xf32>
    %24 = tpu.matmul %22, %23, %cst_19 {dimension_numbers = #tpu.dot_dimension_numbers<[1], [1], [0], [0], [0, 0, 1, 0], [], []>} : vector<8x32xf32>, vector<4x32xf32>, vector<8x4xf32> -> vector<8x4xf32>
    %cst_20 = arith.constant dense<0xFF800000> : vector<8xf32>
    %25 = vector.multi_reduction <maximumf>, %24, %cst_20 [1] : vector<8x4xf32> to vector<8xf32>
    %26 = vector.shape_cast %25 : vector<8xf32> to vector<8x1xf32>
    %27 = vector.broadcast %26 : vector<8x1xf32> to vector<8x4xf32>
    %28 = arith.subf %24, %27 : vector<8x4xf32>
    %29 = math.exp %28 : vector<8x4xf32>
    %cst_21 = arith.constant dense<0.000000e+00> : vector<8xf32>
    %30 = vector.multi_reduction <add>, %29, %cst_21 [1] : vector<8x4xf32> to vector<8xf32>
    %31 = vector.shape_cast %30 : vector<8xf32> to vector<8x1xf32>
    %32 = vector.broadcast %31 : vector<8x1xf32> to vector<8x4xf32>
    %33 = arith.divf %29, %32 : vector<8x4xf32>
    %cst_22 = arith.constant dense<0.000000e+00> : vector<4xf32>
    %34 = vector.multi_reduction <add>, %33, %cst_22 [0] : vector<8x4xf32> to vector<4xf32>
    %35 = vector.shape_cast %34 : vector<4xf32> to vector<1x4xf32>
    %cst_23 = arith.constant 8.000000e+00 : f32
    %36 = vector.broadcast %cst_23 : f32 to vector<1x4xf32>
    %37 = arith.divf %35, %36 : vector<1x4xf32>
    %cst_24 = arith.constant 1.000000e-30 : f32
    %38 = vector.broadcast %cst_24 : f32 to vector<1x4xf32>
    %39 = arith.maximumf %37, %38 : vector<1x4xf32>
    %40 = math.log %39 : vector<1x4xf32>
    %41 = arith.mulf %37, %40 : vector<1x4xf32>
    %cst_25 = arith.constant dense<0.000000e+00> : vector<1xf32>
    %42 = vector.multi_reduction <add>, %41, %cst_25 [1] : vector<1x4xf32> to vector<1xf32>
    %43 = vector.shape_cast %42 : vector<1xf32> to vector<1x1xf32>
    %cst_26 = arith.constant 0.000000e+00 : f32
    %44 = vector.broadcast %cst_26 : f32 to vector<1x1xf32>
    %45 = arith.subf %44, %43 : vector<1x1xf32>
    %cst_27 = arith.constant dense<0.000000e+00> : vector<1x16xf32>
    %46 = tpu.matmul %37, %3, %cst_27 {dimension_numbers = #tpu.dot_dimension_numbers<[1], [0], [0], [1], [0, 0, 1, 1], [], []>} : vector<1x4xf32>, vector<4x16xf32>, vector<1x16xf32> -> vector<1x16xf32>
    %47 = arith.addf %46, %7 : vector<1x16xf32>
    %48 = math.tanh %47 : vector<1x16xf32>
    %cst_28 = arith.constant dense<0.000000e+00> : vector<1x8xf32>
    %49 = tpu.matmul %48, %4, %cst_28 {dimension_numbers = #tpu.dot_dimension_numbers<[1], [0], [0], [1], [0, 0, 1, 1], [], []>} : vector<1x16xf32>, vector<16x8xf32>, vector<1x8xf32> -> vector<1x8xf32>
    %50 = arith.addf %49, %8 : vector<1x8xf32>
    %51 = math.tanh %50 : vector<1x8xf32>
    %cst_29 = arith.constant dense<0.000000e+00> : vector<1x4xf32>
    %52 = tpu.matmul %51, %5, %cst_29 {dimension_numbers = #tpu.dot_dimension_numbers<[1], [0], [0], [1], [0, 0, 1, 1], [], []>} : vector<1x8xf32>, vector<8x4xf32>, vector<1x4xf32> -> vector<1x4xf32>
    %53 = arith.addf %52, %9 : vector<1x4xf32>
    %54 = math.tanh %53 : vector<1x4xf32>
    %cst_30 = arith.constant dense<0.000000e+00> : vector<1x1xf32>
    %55 = tpu.matmul %54, %6, %cst_30 {dimension_numbers = #tpu.dot_dimension_numbers<[1], [0], [0], [1], [0, 0, 1, 1], [], []>} : vector<1x4xf32>, vector<4x1xf32>, vector<1x1xf32> -> vector<1x1xf32>
    %56 = arith.addf %55, %10 : vector<1x1xf32>
    %c0_31 = arith.constant 0 : index
    %57 = memref.load %arg2[%c0_31] : memref<2xf32, #tpu.memory_space<smem>>
    %58 = vector.broadcast %57 : f32 to vector<1x1xf32>
    %59 = arith.subf %56, %58 : vector<1x1xf32>
    %60 = arith.mulf %59, %59 : vector<1x1xf32>
    %c0_32 = arith.constant 0 : index
    %c0_33 = arith.constant 0 : index
    %61 = vector.load %arg3[%c0_32, %c0_33] : memref<8x4xf32, #tpu.memory_space<vmem>>, vector<1x4xf32>
    tpu.vector_store %arg3[%c0_32, %c0_33], %37 {strides = array<i32>} : memref<8x4xf32, #tpu.memory_space<vmem>>, vector<1x4xf32>,
    %62 = vector.shape_cast %56 : vector<1x1xf32> to vector<1x1xf32>
    %63 = vector.broadcast %62 : vector<1x1xf32> to vector<1x4xf32>
    %c2 = arith.constant 2 : index
    %c0_34 = arith.constant 0 : index
    %64 = vector.load %arg3[%c2, %c0_34] : memref<8x4xf32, #tpu.memory_space<vmem>>, vector<1x4xf32>
    tpu.vector_store %arg3[%c2, %c0_34], %63 {strides = array<i32>} : memref<8x4xf32, #tpu.memory_space<vmem>>, vector<1x4xf32>,
    %65 = vector.shape_cast %45 : vector<1x1xf32> to vector<1x1xf32>
    %66 = vector.broadcast %65 : vector<1x1xf32> to vector<1x4xf32>
    %c4 = arith.constant 4 : index
    %c0_35 = arith.constant 0 : index
    %67 = vector.load %arg3[%c4, %c0_35] : memref<8x4xf32, #tpu.memory_space<vmem>>, vector<1x4xf32>
    tpu.vector_store %arg3[%c4, %c0_35], %66 {strides = array<i32>} : memref<8x4xf32, #tpu.memory_space<vmem>>, vector<1x4xf32>,
    %c4_36 = arith.constant 4 : index
    %c0_37 = arith.constant 0 : index
    %68 = vector.load %arg1[%c4_36, %c0_37] : memref<8x32xf32, #tpu.memory_space<vmem>>, vector<4x32xf32>
    %cst_38 = arith.constant dense<0.000000e+00> : vector<8x4xf32>
    %69 = tpu.matmul %22, %68, %cst_38 {dimension_numbers = #tpu.dot_dimension_numbers<[1], [1], [0], [0], [0, 0, 1, 0], [], []>} : vector<8x32xf32>, vector<4x32xf32>, vector<8x4xf32> -> vector<8x4xf32>
    %cst_39 = arith.constant dense<0xFF800000> : vector<8xf32>
    %70 = vector.multi_reduction <maximumf>, %69, %cst_39 [1] : vector<8x4xf32> to vector<8xf32>
    %71 = vector.shape_cast %70 : vector<8xf32> to vector<8x1xf32>
    %72 = vector.broadcast %71 : vector<8x1xf32> to vector<8x4xf32>
    %73 = arith.subf %69, %72 : vector<8x4xf32>
    %74 = math.exp %73 : vector<8x4xf32>
    %cst_40 = arith.constant dense<0.000000e+00> : vector<8xf32>
    %75 = vector.multi_reduction <add>, %74, %cst_40 [1] : vector<8x4xf32> to vector<8xf32>
    %76 = vector.shape_cast %75 : vector<8xf32> to vector<8x1xf32>
    %77 = vector.broadcast %76 : vector<8x1xf32> to vector<8x4xf32>
    %78 = arith.divf %74, %77 : vector<8x4xf32>
    %cst_41 = arith.constant dense<0.000000e+00> : vector<4xf32>
    %79 = vector.multi_reduction <add>, %78, %cst_41 [0] : vector<8x4xf32> to vector<4xf32>
    %80 = vector.shape_cast %79 : vector<4xf32> to vector<1x4xf32>
    %cst_42 = arith.constant 8.000000e+00 : f32
    %81 = vector.broadcast %cst_42 : f32 to vector<1x4xf32>
    %82 = arith.divf %80, %81 : vector<1x4xf32>
    %cst_43 = arith.constant 1.000000e-30 : f32
    %83 = vector.broadcast %cst_43 : f32 to vector<1x4xf32>
    %84 = arith.maximumf %82, %83 : vector<1x4xf32>
    %85 = math.log %84 : vector<1x4xf32>
    %86 = arith.mulf %82, %85 : vector<1x4xf32>
    %cst_44 = arith.constant dense<0.000000e+00> : vector<1xf32>
    %87 = vector.multi_reduction <add>, %86, %cst_44 [1] : vector<1x4xf32> to vector<1xf32>
    %88 = vector.shape_cast %87 : vector<1xf32> to vector<1x1xf32>
    %cst_45 = arith.constant 0.000000e+00 : f32
    %89 = vector.broadcast %cst_45 : f32 to vector<1x1xf32>
    %90 = arith.subf %89, %88 : vector<1x1xf32>
    %cst_46 = arith.constant dense<0.000000e+00> : vector<1x16xf32>
    %91 = tpu.matmul %82, %3, %cst_46 {dimension_numbers = #tpu.dot_dimension_numbers<[1], [0], [0], [1], [0, 0, 1, 1], [], []>} : vector<1x4xf32>, vector<4x16xf32>, vector<1x16xf32> -> vector<1x16xf32>
    %92 = arith.addf %91, %7 : vector<1x16xf32>
    %93 = math.tanh %92 : vector<1x16xf32>
    %cst_47 = arith.constant dense<0.000000e+00> : vector<1x8xf32>
    %94 = tpu.matmul %93, %4, %cst_47 {dimension_numbers = #tpu.dot_dimension_numbers<[1], [0], [0], [1], [0, 0, 1, 1], [], []>} : vector<1x16xf32>, vector<16x8xf32>, vector<1x8xf32> -> vector<1x8xf32>
    %95 = arith.addf %94, %8 : vector<1x8xf32>
    %96 = math.tanh %95 : vector<1x8xf32>
    %cst_48 = arith.constant dense<0.000000e+00> : vector<1x4xf32>
    %97 = tpu.matmul %96, %5, %cst_48 {dimension_numbers = #tpu.dot_dimension_numbers<[1], [0], [0], [1], [0, 0, 1, 1], [], []>} : vector<1x8xf32>, vector<8x4xf32>, vector<1x4xf32> -> vector<1x4xf32>
    %98 = arith.addf %97, %9 : vector<1x4xf32>
    %99 = math.tanh %98 : vector<1x4xf32>
    %cst_49 = arith.constant dense<0.000000e+00> : vector<1x1xf32>
    %100 = tpu.matmul %99, %6, %cst_49 {dimension_numbers = #tpu.dot_dimension_numbers<[1], [0], [0], [1], [0, 0, 1, 1], [], []>} : vector<1x4xf32>, vector<4x1xf32>, vector<1x1xf32> -> vector<1x1xf32>
    %101 = arith.addf %100, %10 : vector<1x1xf32>
    %c1 = arith.constant 1 : index
    %102 = memref.load %arg2[%c1] : memref<2xf32, #tpu.memory_space<smem>>
    %103 = vector.broadcast %102 : f32 to vector<1x1xf32>
    %104 = arith.subf %101, %103 : vector<1x1xf32>
    %105 = arith.mulf %104, %104 : vector<1x1xf32>
    %106 = arith.addf %60, %105 : vector<1x1xf32>
    %c1_50 = arith.constant 1 : index
    %c0_51 = arith.constant 0 : index
    %107 = vector.load %arg3[%c1_50, %c0_51] : memref<8x4xf32, #tpu.memory_space<vmem>>, vector<1x4xf32>
    tpu.vector_store %arg3[%c1_50, %c0_51], %82 {strides = array<i32>} : memref<8x4xf32, #tpu.memory_space<vmem>>, vector<1x4xf32>,
    %108 = vector.shape_cast %101 : vector<1x1xf32> to vector<1x1xf32>
    %109 = vector.broadcast %108 : vector<1x1xf32> to vector<1x4xf32>
    %c3 = arith.constant 3 : index
    %c0_52 = arith.constant 0 : index
    %110 = vector.load %arg3[%c3, %c0_52] : memref<8x4xf32, #tpu.memory_space<vmem>>, vector<1x4xf32>
    tpu.vector_store %arg3[%c3, %c0_52], %109 {strides = array<i32>} : memref<8x4xf32, #tpu.memory_space<vmem>>, vector<1x4xf32>,
    %111 = vector.shape_cast %90 : vector<1x1xf32> to vector<1x1xf32>
    %112 = vector.broadcast %111 : vector<1x1xf32> to vector<1x4xf32>
    %c5 = arith.constant 5 : index
    %c0_53 = arith.constant 0 : index
    %113 = vector.load %arg3[%c5, %c0_53] : memref<8x4xf32, #tpu.memory_space<vmem>>, vector<1x4xf32>
    tpu.vector_store %arg3[%c5, %c0_53], %112 {strides = array<i32>} : memref<8x4xf32, #tpu.memory_space<vmem>>, vector<1x4xf32>,
    %cst_54 = arith.constant 5.000000e-01 : f32
    %114 = vector.broadcast %cst_54 : f32 to vector<1x1xf32>
    %115 = arith.mulf %106, %114 : vector<1x1xf32>
    %116 = vector.shape_cast %115 : vector<1x1xf32> to vector<1x1xf32>
    %117 = vector.broadcast %116 : vector<1x1xf32> to vector<2x4xf32>
    %c6 = arith.constant 6 : index
    %c0_55 = arith.constant 0 : index
    %118 = vector.load %arg3[%c6, %c0_55] : memref<8x4xf32, #tpu.memory_space<vmem>>, vector<2x4xf32>
    tpu.vector_store %arg3[%c6, %c0_55], %117 {strides = array<i32>} : memref<8x4xf32, #tpu.memory_space<vmem>>, vector<2x4xf32>,
    return
  }
}

</mosaic_0001>

<llo_original>
// kernel: forward.1
$region0: #{forward.1}
  #allocation0 [shape = 'u32[]', space=smem, size = 0x4, offset = 0x4, fixed_abs, tag = 'smem constant byte address 0x4 - core index']
  #allocation1 [shape = 'u32[144,128]{1,0:T(1,128)}', space=vmem, size = 0x12000, scoped, tag = 'internal scratch']
  %s0 = inlined_call_operand.hbm [shape: f32[32,128], index: 0, kind: input, shape index: {}]
  %s1 = inlined_call_operand.hbm [shape: f32[8,32], index: 1, kind: input, shape index: {}]
  %s2 = inlined_call_operand.vmem [shape: f32[2], index: 2, kind: input, shape index: {}]
  %s3 = inlined_call_operand.vmem [shape: f32[8,4], index: 3, kind: output, shape index: {}]
  %s4 = sld [smem:[#allocation0]]
  $region34: #{forward.1} parent=0
    _
  %s6 = ssub.s32 1, %s4
  %s7 = scalar_select 0, %s6, %s4
  $region1: #{forward.1} parent=0
    #allocation2 [shape = 'u8[16384]{0}', space=vmem, size = 0x4000, scoped, tag = 'input window, operand 0, single buffered']
    #allocation3 [shape = 's32[1]{0}', space=sflag, size = 0x4, scoped, tag = 'scoped memory for forward.1']
    #allocation4 [shape = 's32[1]{0}', space=sflag, size = 0x4, scoped, tag = 'scoped memory for forward.1']
    #allocation5 [shape = 'u8[4096]{0}', space=vmem, size = 0x1000, scoped, tag = 'input window, operand 1, single buffered']
    #allocation6 [shape = 's32[1]{0}', space=sflag, size = 0x4, scoped, tag = 'scoped memory for forward.1']
    #allocation7 [shape = 'u8[512]{0}', space=smem, size = 0x200, scoped, tag = 'input window, operand 2, single buffered']
    %8 = vsyncpa [#allocation3], 0
    %9 = vsyncpa [#allocation6], 0
    %10 = vsyncpa [#allocation4], 0
    // Predicated region
    $region2: #{forward.1} parent=1 // pred_check
      _
    $region3: #{forward.1} parent=1 // pred_check_branch
      %12 = sbr.rel (0) target = $region5
    $region4: #{forward.1} parent=1 // pred_region
      %s14 = ssub.s32 512, 512
      %15 = vsyncadd [#allocation3], %s14
      %s16 = sshll.u32 [#allocation2], 4
      %s17 = int_to_ptr.vmem [resolvable:$true] %s16
      %22 = dma.hbm_to_vmem [thread:$0]  %s0, 512, %s17, [#allocation3], 128, 128, 8
    $region5: #{forward.1} parent=1 // pred_fallthru
      _
    // Predicated region
    $region6: #{forward.1} parent=1 // pred_check
      _
    $region7: #{forward.1} parent=1 // pred_check_branch
      %24 = sbr.rel (0) target = $region9
    $region8: #{forward.1} parent=1 // pred_region
      %s26 = ssub.s32 128, 128
      %27 = vsyncadd [#allocation6], %s26
      %s29 = sshll.u32 [#allocation5], 4
      %s30 = int_to_ptr.vmem [resolvable:$true] %s29
      %32 = dma.hbm_to_vmem [thread:$0]  %s1, 128, %s30, [#allocation6]
    $region9: #{forward.1} parent=1 // pred_fallthru
      _
    // Predicated region
    $region10: #{forward.1} parent=1 // pred_check
      _
    $region11: #{forward.1} parent=1 // pred_check_branch
      %34 = sbr.rel (0) target = $region13
    $region12: #{forward.1} parent=1 // pred_region
      %s36 = ssub.s32 16, 16
      %37 = vsyncadd [#allocation4], %s36
      %s39 = sshll.u32 %s2, 4
      %s40 = int_to_ptr.vmem [resolvable:$true] %s39
      %42 = dma.vmem_to_smem %s40, 16, [#allocation7], [#allocation4]
    $region13: #{forward.1} parent=1 // pred_fallthru
      _
    // Predicated region
    $region14: #{forward.1} parent=1 // pred_check
      _
    $region15: #{forward.1} parent=1 // pred_check_branch
      %44 = sbr.rel (0) target = $region17
    $region16: #{forward.1} parent=1 // pred_region
      %45 = dma.done [#allocation3], 512
    $region17: #{forward.1} parent=1 // pred_fallthru
      _
    // Predicated region
    $region18: #{forward.1} parent=1 // pred_check
      _
    $region19: #{forward.1} parent=1 // pred_check_branch
      %47 = sbr.rel (0) target = $region21
    $region20: #{forward.1} parent=1 // pred_region
      %48 = dma.done [#allocation6], 128
    $region21: #{forward.1} parent=1 // pred_fallthru
      _
    // Predicated region
    $region22: #{forward.1} parent=1 // pred_check
      _
    $region23: #{forward.1} parent=1 // pred_check_branch
      %50 = sbr.rel (0) target = $region25
    $region24: #{forward.1} parent=1 // pred_region
      %51 = dma.done [#allocation4], 16
    $region25: #{forward.1} parent=1 // pred_fallthru
      _
    %52 = sfence
    %v53 = vld [vmem:[#allocation2] sm:$0xff]
    %v54 = vld [vmem:[#allocation2 + $0x8] sm:$0xff]
    %v55 = vld [vmem:[#allocation2 + $0x10] sm:$0xff]
    %v56 = vld [vmem:[#allocation2 + $0x18] sm:$0xf]
    %v57 = vld [vmem:[#allocation2 + $0x1c] sm:$0x1]
    %v58 = vld [vmem:[#allocation2 + $0x1d] sm:$0x1]
    %v59 = vld [vmem:[#allocation2 + $0x1e] sm:$0x1]
    %v60 = vld [vmem:[#allocation2 + $0x1f] sm:$0x1]
    %vm61 = vcmask 130048
    %v63 = vsel %vm61, %v53, 0
    %65 = vmatprep.subr.mxu0 0.0
    %66 = vmatpush1.msra.mxu0 0.0
    %67 = vmatprep.subr.mxu0 0.0
    %68 = vmatpush1.msra.mxu0 0.0
    %69 = vmatprep.subr.mxu0 0.0
    %70 = vmatpush1.msra.mxu0 0.0
    %71 = vmatprep.subr.mxu0 0.0
    %72 = vmatpush1.msra.mxu0 0.0
    %73 = vmatprep.subr.mxu0 0.0
    %74 = vmatpush1.msra.mxu0 0.0
    %75 = vmatprep.subr.mxu0 0.0
    %76 = vmatpush1.msra.mxu0 0.0
    %77 = vmatprep.subr.mxu0 0.0
    %78 = vmatpush1.msra.mxu0 0.0
    %79 = vmatprep.subr.mxu0 0.0
    %80 = vmatpush1.msra.mxu0 0.0
    %81 = vmatprep.subr.mxu0 0.0
    %82 = vmatpush1.msra.mxu0 0.0
    %83 = vmatprep.subr.mxu0 0.0
    %84 = vmatpush1.msra.mxu0 0.0
    %85 = vmatprep.subr.mxu0 0.0
    %86 = vmatpush1.msra.mxu0 0.0
    %87 = vmatprep.subr.mxu0 0.0
    %88 = vmatpush1.msra.mxu0 0.0
    %89 = vmatprep.subr.mxu0 0.0
    %90 = vmatpush1.msra.mxu0 0.0
    %91 = vmatprep.subr.mxu0 0.0
    %92 = vmatpush1.msra.mxu0 0.0
    %93 = vmatprep.subr.mxu0 0.0
    %94 = vmatpush1.msra.mxu0 %v55
    %95 = vmatprep.subr.mxu0 0.0
    %96 = vmatpush1.msra.mxu0 %v54
    %97 = vmatprep.subr.mxu0 0.0
    %98 = vmatpush2.msra.mxu0 0.0
    %99 = vmatprep.subr.mxu0 0.0
    %100 = vmatpush2.msra.mxu0 0.0
    %101 = vmatprep.subr.mxu0 0.0
    %102 = vmatpush2.msra.mxu0 0.0
    %103 = vmatprep.subr.mxu0 0.0
    %104 = vmatpush2.msra.mxu0 0.0
    %105 = vmatprep.subr.mxu0 0.0
    %106 = vmatpush2.msra.mxu0 0.0
    %107 = vmatprep.subr.mxu0 0.0
    %108 = vmatpush2.msra.mxu0 0.0
    %109 = vmatprep.subr.mxu0 0.0
    %110 = vmatpush2.msra.mxu0 0.0
    %111 = vmatprep.subr.mxu0 0.0
    %112 = vmatpush2.msra.mxu0 0.0
    %113 = vmatprep.subr.mxu0 0.0
    %114 = vmatpush2.msra.mxu0 0.0
    %115 = vmatprep.subr.mxu0 0.0
    %116 = vmatpush2.msra.mxu0 0.0
    %117 = vmatprep.subr.mxu0 0.0
    %118 = vmatpush2.msra.mxu0 0.0
    %119 = vmatprep.subr.mxu0 0.0
    %120 = vmatpush2.msra.mxu0 0.0
    %121 = vmatprep.subr.mxu0 0.0
    %122 = vmatpush2.msra.mxu0 0.0
    %123 = vmatprep.subr.mxu0 0.0
    %124 = vmatpush2.msra.mxu0 0.0
    %125 = vmatprep.subr.mxu0 0.0
    %126 = vmatpush2.msra.mxu0 0.0
    %127 = vmatprep.subr.mxu0 0.0
    %128 = vmatpush2.msra.mxu0 0.0
    %129 = vmatprep.mubr.f32.mxu0 0.0
    %130 = vmatmul.mubr.f32.gmra.mxu0 %v63
    %v131 = vpop.f32.mrf.mxu0
    %v132 = vadd.f32 0.0, %v131
    %v133 = vpop.f32.mrf.mxu0
    %134 = vdwg.mxu0
    %vm135 = vcmp.gt.f32.partialorder %v132, 0.0
    %v136 = vmul.f32 %v132, 0.01
    %v137 = vsel %vm135, %v132, %v136
    %138 = vrot.lane.b32.xlu0 %v53, 96
    %v139 = vpop.permute.xlu0 %138
    %vm141 = vcmask 64512
    %v143 = vsel %vm141, %v137, 0
    %145 = vmatprep.subr.mxu0 0.0
    %146 = vmatpush1.msra.mxu0 0.0
    %147 = vmatprep.subr.mxu0 0.0
    %148 = vmatpush1.msra.mxu0 0.0
    %149 = vmatprep.subr.mxu0 0.0
    %150 = vmatpush1.msra.mxu0 0.0
    %151 = vmatprep.subr.mxu0 0.0
    %152 = vmatpush1.msra.mxu0 0.0
    %153 = vmatprep.subr.mxu0 0.0
    %154 = vmatpush1.msra.mxu0 0.0
    %155 = vmatprep.subr.mxu0 0.0
    %156 = vmatpush1.msra.mxu0 0.0
    %157 = vmatprep.subr.mxu0 0.0
    %158 = vmatpush1.msra.mxu0 0.0
    %159 = vmatprep.subr.mxu0 0.0
    %160 = vmatpush1.msra.mxu0 0.0
    %161 = vmatprep.subr.mxu0 0.0
    %162 = vmatpush1.msra.mxu0 0.0
    %163 = vmatprep.subr.mxu0 0.0
    %164 = vmatpush1.msra.mxu0 0.0
    %165 = vmatprep.subr.mxu0 0.0
    %166 = vmatpush1.msra.mxu0 0.0
    %167 = vmatprep.subr.mxu0 0.0
    %168 = vmatpush1.msra.mxu0 0.0
    %169 = vmatprep.subr.mxu0 0.0
    %170 = vmatpush1.msra.mxu0 0.0
    %171 = vmatprep.subr.mxu0 0.0
    %172 = vmatpush1.msra.mxu0 0.0
    %173 = vmatprep.subr.mxu0 0.0
    %174 = vmatpush1.msra.mxu0 0.0
    %175 = vmatprep.subr.mxu0 0.0
    %176 = vmatpush1.msra.mxu0 %v139
    %177 = vmatprep.subr.mxu0 0.0
    %178 = vmatpush2.msra.mxu0 0.0
    %179 = vmatprep.subr.mxu0 0.0
    %180 = vmatpush2.msra.mxu0 0.0
    %181 = vmatprep.subr.mxu0 0.0
    %182 = vmatpush2.msra.mxu0 0.0
    %183 = vmatprep.subr.mxu0 0.0
    %184 = vmatpush2.msra.mxu0 0.0
    %185 = vmatprep.subr.mxu0 0.0
    %186 = vmatpush2.msra.mxu0 0.0
    %187 = vmatprep.subr.mxu0 0.0
    %188 = vmatpush2.msra.mxu0 0.0
    %189 = vmatprep.subr.mxu0 0.0
    %190 = vmatpush2.msra.mxu0 0.0
    %191 = vmatprep.subr.mxu0 0.0
    %192 = vmatpush2.msra.mxu0 0.0
    %193 = vmatprep.subr.mxu0 0.0
    %194 = vmatpush2.msra.mxu0 0.0
    %195 = vmatprep.subr.mxu0 0.0
    %196 = vmatpush2.msra.mxu0 0.0
    %197 = vmatprep.subr.mxu0 0.0
    %198 = vmatpush2.msra.mxu0 0.0
    %199 = vmatprep.subr.mxu0 0.0
    %200 = vmatpush2.msra.mxu0 0.0
    %201 = vmatprep.subr.mxu0 0.0
    %202 = vmatpush2.msra.mxu0 0.0
    %203 = vmatprep.subr.mxu0 0.0
    %204 = vmatpush2.msra.mxu0 0.0
    %205 = vmatprep.subr.mxu0 0.0
    %206 = vmatpush2.msra.mxu0 0.0
    %207 = vmatprep.subr.mxu0 0.0
    %208 = vmatpush2.msra.mxu0 0.0
    %209 = vmatprep.mubr.f32.mxu0 0.0
    %210 = vmatmul.mubr.f32.gmra.mxu0 %v143
    %v211 = vpop.f32.mrf.mxu0
    %v212 = vadd.f32 0.0, %v211
    %v213 = vpop.f32.mrf.mxu0
    %214 = vdwg.mxu0
    %vm215 = vcmp.gt.f32.partialorder %v212, 0.0
    %v216 = vmul.f32 %v212, 0.01
    %v217 = vsel %vm215, %v212, %v216
    %v218 = vld [vmem:[#allocation5] sm:$0xf]
    %vm219 = vcmask 261120
    %v221 = vsel %vm219, %v217, 0
    %v224 = vsel %vm219, %v218, 0
    %226 = vmatprep.subr.mxu0 0.0
    %227 = vmatpush1.xpose.msra.mxu0 0.0
    %228 = vmatprep.subr.mxu0 0.0
    %229 = vmatpush1.xpose.msra.mxu0 0.0
    %230 = vmatprep.subr.mxu0 0.0
    %231 = vmatpush1.xpose.msra.mxu0 0.0
    %232 = vmatprep.subr.mxu0 0.0
    %233 = vmatpush1.xpose.msra.mxu0 0.0
    %234 = vmatprep.subr.mxu0 0.0
    %235 = vmatpush1.xpose.msra.mxu0 0.0
    %236 = vmatprep.subr.mxu0 0.0
    %237 = vmatpush1.xpose.msra.mxu0 0.0
    %238 = vmatprep.subr.mxu0 0.0
    %239 = vmatpush1.xpose.msra.mxu0 0.0
    %240 = vmatprep.subr.mxu0 0.0
    %241 = vmatpush1.xpose.msra.mxu0 0.0
    %242 = vmatprep.subr.mxu0 0.0
    %243 = vmatpush1.xpose.msra.mxu0 0.0
    %244 = vmatprep.subr.mxu0 0.0
    %245 = vmatpush1.xpose.msra.mxu0 0.0
    %246 = vmatprep.subr.mxu0 0.0
    %247 = vmatpush1.xpose.msra.mxu0 0.0
    %248 = vmatprep.subr.mxu0 0.0
    %249 = vmatpush1.xpose.msra.mxu0 0.0
    %250 = vmatprep.subr.mxu0 0.0
    %251 = vmatpush1.xpose.msra.mxu0 0.0
    %252 = vmatprep.subr.mxu0 0.0
    %253 = vmatpush1.xpose.msra.mxu0 0.0
    %254 = vmatprep.subr.mxu0 0.0
    %255 = vmatpush1.xpose.msra.mxu0 0.0
    %256 = vmatprep.subr.mxu0 0.0
    %257 = vmatpush1.xpose.msra.mxu0 %v224
    %258 = vmatprep.subr.mxu0 0.0
    %259 = vmatpush2.xpose.msra.mxu0 0.0
    %260 = vmatprep.subr.mxu0 0.0
    %261 = vmatpush2.xpose.msra.mxu0 0.0
    %262 = vmatprep.subr.mxu0 0.0
    %263 = vmatpush2.xpose.msra.mxu0 0.0
    %264 = vmatprep.subr.mxu0 0.0
    %265 = vmatpush2.xpose.msra.mxu0 0.0
    %266 = vmatprep.subr.mxu0 0.0
    %267 = vmatpush2.xpose.msra.mxu0 0.0
    %268 = vmatprep.subr.mxu0 0.0
    %269 = vmatpush2.xpose.msra.mxu0 0.0
    %270 = vmatprep.subr.mxu0 0.0
    %271 = vmatpush2.xpose.msra.mxu0 0.0
    %272 = vmatprep.subr.mxu0 0.0
    %273 = vmatpush2.xpose.msra.mxu0 0.0
    %274 = vmatprep.subr.mxu0 0.0
    %275 = vmatpush2.xpose.msra.mxu0 0.0
    %276 = vmatprep.subr.mxu0 0.0
    %277 = vmatpush2.xpose.msra.mxu0 0.0
    %278 = vmatprep.subr.mxu0 0.0
    %279 = vmatpush2.xpose.msra.mxu0 0.0
    %280 = vmatprep.subr.mxu0 0.0
    %281 = vmatpush2.xpose.msra.mxu0 0.0
    %282 = vmatprep.subr.mxu0 0.0
    %283 = vmatpush2.xpose.msra.mxu0 0.0
    %284 = vmatprep.subr.mxu0 0.0
    %285 = vmatpush2.xpose.msra.mxu0 0.0
    %286 = vmatprep.subr.mxu0 0.0
    %287 = vmatpush2.xpose.msra.mxu0 0.0
    %288 = vmatprep.subr.mxu0 0.0
    %289 = vmatpush2.xpose.msra.mxu0 0.0
    %290 = vmatprep.mubr.f32.mxu0 0.0
    %291 = vmatmul.mubr.f32.gmra.mxu0 %v221
    %v292 = vpop.f32.mrf.mxu0
    %v293 = vadd.f32 0.0, %v292
    %v294 = vpop.f32.mrf.mxu0
    %295 = vdwg.mxu0
    %vm296 = vcmask 31744
    %v297 = vsel %vm296, %v293, -inf
    %298 = vmax.xlane.f32.xlu0 %v297
    %v299 = vpop.xlane.xlu0 %298
    %v300 = vsub.f32 %v293, %v299
    %v301 = vmul.f32 %v300, 1.442695
    %v302 = vpow.pop %v301
    %v303 = vsel %vm296, %v302, 0.0
    %304 = vadd.xlane.f32.xlu0 %v303
    %v305 = vpop.xlane.xlu0 %304
    %v306 = vrcp.pop %v305
    %v307 = vmul.f32 %v302, %v306
    %v308 = vsel %vm296, %v307, 0.0
    %v309 = vrot.slane %v308, 4
    %v310 = vadd.f32 %v308, %v309
    %v311 = vrot.slane %v310, 2
    %v312 = vadd.f32 %v310, %v311
    %v313 = vrot.slane %v312, 1
    %v314 = vadd.f32 %v312, %v313
    %v315 = vrcp.pop 8.0
    %v316 = vmul.f32 %v314, %v315
    %v317 = vmax.f32 %v316, 1e-30
    %v318 = vlog2.pop %v317
    %v319 = vmul.f32 %v318, 0.6931472
    %v320 = vmul.f32 %v316, %v319
    %v321 = vsel %vm296, %v320, 0.0
    %322 = vadd.xlane.f32.xlu0 %v321
    %v323 = vpop.xlane.xlu0 %322
    %v324 = vsub.f32 0.0, %v323
    %v326 = vsel %vm296, %v316, 0
    %vm328 = vcmask 1043456
    %v330 = vsel %vm328, %v56, 0
    %332 = vmatprep.subr.mxu0 0.0
    %333 = vmatpush1.msra.mxu0 0.0
    %334 = vmatprep.subr.mxu0 0.0
    %335 = vmatpush1.msra.mxu0 0.0
    %336 = vmatprep.subr.mxu0 0.0
    %337 = vmatpush1.msra.mxu0 0.0
    %338 = vmatprep.subr.mxu0 0.0
    %339 = vmatpush1.msra.mxu0 0.0
    %340 = vmatprep.subr.mxu0 0.0
    %341 = vmatpush1.msra.mxu0 0.0
    %342 = vmatprep.subr.mxu0 0.0
    %343 = vmatpush1.msra.mxu0 0.0
    %344 = vmatprep.subr.mxu0 0.0
    %345 = vmatpush1.msra.mxu0 0.0
    %346 = vmatprep.subr.mxu0 0.0
    %347 = vmatpush1.msra.mxu0 0.0
    %348 = vmatprep.subr.mxu0 0.0
    %349 = vmatpush1.msra.mxu0 0.0
    %350 = vmatprep.subr.mxu0 0.0
    %351 = vmatpush1.msra.mxu0 0.0
    %352 = vmatprep.subr.mxu0 0.0
    %353 = vmatpush1.msra.mxu0 0.0
    %354 = vmatprep.subr.mxu0 0.0
    %355 = vmatpush1.msra.mxu0 0.0
    %356 = vmatprep.subr.mxu0 0.0
    %357 = vmatpush1.msra.mxu0 0.0
    %358 = vmatprep.subr.mxu0 0.0
    %359 = vmatpush1.msra.mxu0 0.0
    %360 = vmatprep.subr.mxu0 0.0
    %361 = vmatpush1.msra.mxu0 0.0
    %362 = vmatprep.subr.mxu0 0.0
    %363 = vmatpush1.msra.mxu0 %v330
    %364 = vmatprep.subr.mxu0 0.0
    %365 = vmatpush2.msra.mxu0 0.0
    %366 = vmatprep.subr.mxu0 0.0
    %367 = vmatpush2.msra.mxu0 0.0
    %368 = vmatprep.subr.mxu0 0.0
    %369 = vmatpush2.msra.mxu0 0.0
    %370 = vmatprep.subr.mxu0 0.0
    %371 = vmatpush2.msra.mxu0 0.0
    %372 = vmatprep.subr.mxu0 0.0
    %373 = vmatpush2.msra.mxu0 0.0
    %374 = vmatprep.subr.mxu0 0.0
    %375 = vmatpush2.msra.mxu0 0.0
    %376 = vmatprep.subr.mxu0 0.0
    %377 = vmatpush2.msra.mxu0 0.0
    %378 = vmatprep.subr.mxu0 0.0
    %379 = vmatpush2.msra.mxu0 0.0
    %380 = vmatprep.subr.mxu0 0.0
    %381 = vmatpush2.msra.mxu0 0.0
    %382 = vmatprep.subr.mxu0 0.0
    %383 = vmatpush2.msra.mxu0 0.0
    %384 = vmatprep.subr.mxu0 0.0
    %385 = vmatpush2.msra.mxu0 0.0
    %386 = vmatprep.subr.mxu0 0.0
    %387 = vmatpush2.msra.mxu0 0.0
    %388 = vmatprep.subr.mxu0 0.0
    %389 = vmatpush2.msra.mxu0 0.0
    %390 = vmatprep.subr.mxu0 0.0
    %391 = vmatpush2.msra.mxu0 0.0
    %392 = vmatprep.subr.mxu0 0.0
    %393 = vmatpush2.msra.mxu0 0.0
    %394 = vmatprep.subr.mxu0 0.0
    %395 = vmatpush2.msra.mxu0 0.0
    %396 = vmatprep.mubr.f32.mxu0 0.0
    %397 = vmatmul.mubr.f32.gmra.mxu0 %v326
    %v398 = vpop.f32.mrf.mxu0
    %v399 = vadd.f32 %v57, %v398
    %v400 = vpop.f32.mrf.mxu0
    %401 = vdwg.mxu0
    %v402 = vtanh.pop %v399
    %405 = vrot.lane.b32.xlu0 %v54, 112
    %v406 = vpop.permute.xlu0 %405
    %407 = vrot.lane.b32.xlu0 %v55, 112
    %v408 = vpop.permute.xlu0 %407
    %v412 = vsel %vm61, %v402, 0
    %414 = vmatprep.subr.mxu0 0.0
    %415 = vmatpush1.msra.mxu0 0.0
    %416 = vmatprep.subr.mxu0 0.0
    %417 = vmatpush1.msra.mxu0 0.0
    %418 = vmatprep.subr.mxu0 0.0
    %419 = vmatpush1.msra.mxu0 0.0
    %420 = vmatprep.subr.mxu0 0.0
    %421 = vmatpush1.msra.mxu0 0.0
    %422 = vmatprep.subr.mxu0 0.0
    %423 = vmatpush1.msra.mxu0 0.0
    %424 = vmatprep.subr.mxu0 0.0
    %425 = vmatpush1.msra.mxu0 0.0
    %426 = vmatprep.subr.mxu0 0.0
    %427 = vmatpush1.msra.mxu0 0.0
    %428 = vmatprep.subr.mxu0 0.0
    %429 = vmatpush1.msra.mxu0 0.0
    %430 = vmatprep.subr.mxu0 0.0
    %431 = vmatpush1.msra.mxu0 0.0
    %432 = vmatprep.subr.mxu0 0.0
    %433 = vmatpush1.msra.mxu0 0.0
    %434 = vmatprep.subr.mxu0 0.0
    %435 = vmatpush1.msra.mxu0 0.0
    %436 = vmatprep.subr.mxu0 0.0
    %437 = vmatpush1.msra.mxu0 0.0
    %438 = vmatprep.subr.mxu0 0.0
    %439 = vmatpush1.msra.mxu0 0.0
    %440 = vmatprep.subr.mxu0 0.0
    %441 = vmatpush1.msra.mxu0 0.0
    %442 = vmatprep.subr.mxu0 0.0
    %443 = vmatpush1.msra.mxu0 %v408
    %444 = vmatprep.subr.mxu0 0.0
    %445 = vmatpush1.msra.mxu0 %v406
    %446 = vmatprep.subr.mxu0 0.0
    %447 = vmatpush2.msra.mxu0 0.0
    %448 = vmatprep.subr.mxu0 0.0
    %449 = vmatpush2.msra.mxu0 0.0
    %450 = vmatprep.subr.mxu0 0.0
    %451 = vmatpush2.msra.mxu0 0.0
    %452 = vmatprep.subr.mxu0 0.0
    %453 = vmatpush2.msra.mxu0 0.0
    %454 = vmatprep.subr.mxu0 0.0
    %455 = vmatpush2.msra.mxu0 0.0
    %456 = vmatprep.subr.mxu0 0.0
    %457 = vmatpush2.msra.mxu0 0.0
    %458 = vmatprep.subr.mxu0 0.0
    %459 = vmatpush2.msra.mxu0 0.0
    %460 = vmatprep.subr.mxu0 0.0
    %461 = vmatpush2.msra.mxu0 0.0
    %462 = vmatprep.subr.mxu0 0.0
    %463 = vmatpush2.msra.mxu0 0.0
    %464 = vmatprep.subr.mxu0 0.0
    %465 = vmatpush2.msra.mxu0 0.0
    %466 = vmatprep.subr.mxu0 0.0
    %467 = vmatpush2.msra.mxu0 0.0
    %468 = vmatprep.subr.mxu0 0.0
    %469 = vmatpush2.msra.mxu0 0.0
    %470 = vmatprep.subr.mxu0 0.0
    %471 = vmatpush2.msra.mxu0 0.0
    %472 = vmatprep.subr.mxu0 0.0
    %473 = vmatpush2.msra.mxu0 0.0
    %474 = vmatprep.subr.mxu0 0.0
    %475 = vmatpush2.msra.mxu0 0.0
    %476 = vmatprep.subr.mxu0 0.0
    %477 = vmatpush2.msra.mxu0 0.0
    %478 = vmatprep.mubr.f32.mxu0 0.0
    %479 = vmatmul.mubr.f32.gmra.mxu0 %v412
    %v480 = vpop.f32.mrf.mxu0
    %v481 = vadd.f32 %v58, %v480
    %v482 = vpop.f32.mrf.mxu0
    %483 = vdwg.mxu0
    %v484 = vtanh.pop %v481
    %485 = vrot.lane.b32.xlu0 %v53, 32
    %v486 = vpop.permute.xlu0 %485
    %v489 = vsel %vm141, %v484, 0
    %491 = vmatprep.subr.mxu0 0.0
    %492 = vmatpush1.msra.mxu0 0.0
    %493 = vmatprep.subr.mxu0 0.0
    %494 = vmatpush1.msra.mxu0 0.0
    %495 = vmatprep.subr.mxu0 0.0
    %496 = vmatpush1.msra.mxu0 0.0
    %497 = vmatprep.subr.mxu0 0.0
    %498 = vmatpush1.msra.mxu0 0.0
    %499 = vmatprep.subr.mxu0 0.0
    %500 = vmatpush1.msra.mxu0 0.0
    %501 = vmatprep.subr.mxu0 0.0
    %502 = vmatpush1.msra.mxu0 0.0
    %503 = vmatprep.subr.mxu0 0.0
    %504 = vmatpush1.msra.mxu0 0.0
    %505 = vmatprep.subr.mxu0 0.0
    %506 = vmatpush1.msra.mxu0 0.0
    %507 = vmatprep.subr.mxu0 0.0
    %508 = vmatpush1.msra.mxu0 0.0
    %509 = vmatprep.subr.mxu0 0.0
    %510 = vmatpush1.msra.mxu0 0.0
    %511 = vmatprep.subr.mxu0 0.0
    %512 = vmatpush1.msra.mxu0 0.0
    %513 = vmatprep.subr.mxu0 0.0
    %514 = vmatpush1.msra.mxu0 0.0
    %515 = vmatprep.subr.mxu0 0.0
    %516 = vmatpush1.msra.mxu0 0.0
    %517 = vmatprep.subr.mxu0 0.0
    %518 = vmatpush1.msra.mxu0 0.0
    %519 = vmatprep.subr.mxu0 0.0
    %520 = vmatpush1.msra.mxu0 0.0
    %521 = vmatprep.subr.mxu0 0.0
    %522 = vmatpush1.msra.mxu0 %v486
    %523 = vmatprep.subr.mxu0 0.0
    %524 = vmatpush2.msra.mxu0 0.0
    %525 = vmatprep.subr.mxu0 0.0
    %526 = vmatpush2.msra.mxu0 0.0
    %527 = vmatprep.subr.mxu0 0.0
    %528 = vmatpush2.msra.mxu0 0.0
    %529 = vmatprep.subr.mxu0 0.0
    %530 = vmatpush2.msra.mxu0 0.0
    %531 = vmatprep.subr.mxu0 0.0
    %532 = vmatpush2.msra.mxu0 0.0
    %533 = vmatprep.subr.mxu0 0.0
    %534 = vmatpush2.msra.mxu0 0.0
    %535 = vmatprep.subr.mxu0 0.0
    %536 = vmatpush2.msra.mxu0 0.0
    %537 = vmatprep.subr.mxu0 0.0
    %538 = vmatpush2.msra.mxu0 0.0
    %539 = vmatprep.subr.mxu0 0.0
    %540 = vmatpush2.msra.mxu0 0.0
    %541 = vmatprep.subr.mxu0 0.0
    %542 = vmatpush2.msra.mxu0 0.0
    %543 = vmatprep.subr.mxu0 0.0
    %544 = vmatpush2.msra.mxu0 0.0
    %545 = vmatprep.subr.mxu0 0.0
    %546 = vmatpush2.msra.mxu0 0.0
    %547 = vmatprep.subr.mxu0 0.0
    %548 = vmatpush2.msra.mxu0 0.0
    %549 = vmatprep.subr.mxu0 0.0
    %550 = vmatpush2.msra.mxu0 0.0
    %551 = vmatprep.subr.mxu0 0.0
    %552 = vmatpush2.msra.mxu0 0.0
    %553 = vmatprep.subr.mxu0 0.0
    %554 = vmatpush2.msra.mxu0 0.0
    %555 = vmatprep.mubr.f32.mxu0 0.0
    %556 = vmatmul.mubr.f32.gmra.mxu0 %v489
    %v557 = vpop.f32.mrf.mxu0
    %v558 = vadd.f32 %v59, %v557
    %v559 = vpop.f32.mrf.mxu0
    %560 = vdwg.mxu0
    %v561 = vtanh.pop %v558
    %562 = vrot.lane.b32.xlu0 %v56, 96
    %v563 = vpop.permute.xlu0 %562
    %v565 = vsel %vm296, %v561, 0
    %v567 = vsel %vm328, %v563, 0
    %569 = vmatprep.subr.mxu0 0.0
    %570 = vmatpush1.msra.mxu0 0.0
    %571 = vmatprep.subr.mxu0 0.0
    %572 = vmatpush1.msra.mxu0 0.0
    %573 = vmatprep.subr.mxu0 0.0
    %574 = vmatpush1.msra.mxu0 0.0
    %575 = vmatprep.subr.mxu0 0.0
    %576 = vmatpush1.msra.mxu0 0.0
    %577 = vmatprep.subr.mxu0 0.0
    %578 = vmatpush1.msra.mxu0 0.0
    %579 = vmatprep.subr.mxu0 0.0
    %580 = vmatpush1.msra.mxu0 0.0
    %581 = vmatprep.subr.mxu0 0.0
    %582 = vmatpush1.msra.mxu0 0.0
    %583 = vmatprep.subr.mxu0 0.0
    %584 = vmatpush1.msra.mxu0 0.0
    %585 = vmatprep.subr.mxu0 0.0
    %586 = vmatpush1.msra.mxu0 0.0
    %587 = vmatprep.subr.mxu0 0.0
    %588 = vmatpush1.msra.mxu0 0.0
    %589 = vmatprep.subr.mxu0 0.0
    %590 = vmatpush1.msra.mxu0 0.0
    %591 = vmatprep.subr.mxu0 0.0
    %592 = vmatpush1.msra.mxu0 0.0
    %593 = vmatprep.subr.mxu0 0.0
    %594 = vmatpush1.msra.mxu0 0.0
    %595 = vmatprep.subr.mxu0 0.0
    %596 = vmatpush1.msra.mxu0 0.0
    %597 = vmatprep.subr.mxu0 0.0
    %598 = vmatpush1.msra.mxu0 0.0
    %599 = vmatprep.subr.mxu0 0.0
    %600 = vmatpush1.msra.mxu0 %v567
    %601 = vmatprep.subr.mxu0 0.0
    %602 = vmatpush2.msra.mxu0 0.0
    %603 = vmatprep.subr.mxu0 0.0
    %604 = vmatpush2.msra.mxu0 0.0
    %605 = vmatprep.subr.mxu0 0.0
    %606 = vmatpush2.msra.mxu0 0.0
    %607 = vmatprep.subr.mxu0 0.0
    %608 = vmatpush2.msra.mxu0 0.0
    %609 = vmatprep.subr.mxu0 0.0
    %610 = vmatpush2.msra.mxu0 0.0
    %611 = vmatprep.subr.mxu0 0.0
    %612 = vmatpush2.msra.mxu0 0.0
    %613 = vmatprep.subr.mxu0 0.0
    %614 = vmatpush2.msra.mxu0 0.0
    %615 = vmatprep.subr.mxu0 0.0
    %616 = vmatpush2.msra.mxu0 0.0
    %617 = vmatprep.subr.mxu0 0.0
    %618 = vmatpush2.msra.mxu0 0.0
    %619 = vmatprep.subr.mxu0 0.0
    %620 = vmatpush2.msra.mxu0 0.0
    %621 = vmatprep.subr.mxu0 0.0
    %622 = vmatpush2.msra.mxu0 0.0
    %623 = vmatprep.subr.mxu0 0.0
    %624 = vmatpush2.msra.mxu0 0.0
    %625 = vmatprep.subr.mxu0 0.0
    %626 = vmatpush2.msra.mxu0 0.0
    %627 = vmatprep.subr.mxu0 0.0
    %628 = vmatpush2.msra.mxu0 0.0
    %629 = vmatprep.subr.mxu0 0.0
    %630 = vmatpush2.msra.mxu0 0.0
    %631 = vmatprep.subr.mxu0 0.0
    %632 = vmatpush2.msra.mxu0 0.0
    %633 = vmatprep.mubr.f32.mxu0 0.0
    %634 = vmatmul.mubr.f32.gmra.mxu0 %v565
    %v635 = vpop.f32.mrf.mxu0
    %v636 = vadd.f32 %v60, %v635
    %v637 = vpop.f32.mrf.mxu0
    %638 = vdwg.mxu0
    %s639 = sld [smem:[#allocation7]]
    %v640 = vstv %s639
    %v641 = vsub.f32 %v636, %v640
    %v642 = vmul.f32 %v641, %v641
    %vm643 = vcmask 24576
    %644 = vst.msk [vmem:[%s3] sm:$0x1] %vm643, %v316
    %646 = vset.pattern.permute.xlu0 0
    %647 = vperm.xlu0 %646, %v636
    %v648 = vpop.permute.xlu0 %647
    %650 = vst.msk [vmem:[%s3 + $0x2] sm:$0x1] %vm643, %v648
    %651 = vst.msk [vmem:[%s3 + $0x4] sm:$0x1] %vm643, %v324
    %v652 = vld [vmem:[#allocation5 + $0x4] sm:$0xf]
    %v654 = vsel %vm219, %v652, 0
    %656 = vmatprep.subr.mxu0 0.0
    %657 = vmatpush1.xpose.msra.mxu0 0.0
    %658 = vmatprep.subr.mxu0 0.0
    %659 = vmatpush1.xpose.msra.mxu0 0.0
    %660 = vmatprep.subr.mxu0 0.0
    %661 = vmatpush1.xpose.msra.mxu0 0.0
    %662 = vmatprep.subr.mxu0 0.0
    %663 = vmatpush1.xpose.msra.mxu0 0.0
    %664 = vmatprep.subr.mxu0 0.0
    %665 = vmatpush1.xpose.msra.mxu0 0.0
    %666 = vmatprep.subr.mxu0 0.0
    %667 = vmatpush1.xpose.msra.mxu0 0.0
    %668 = vmatprep.subr.mxu0 0.0
    %669 = vmatpush1.xpose.msra.mxu0 0.0
    %670 = vmatprep.subr.mxu0 0.0
    %671 = vmatpush1.xpose.msra.mxu0 0.0
    %672 = vmatprep.subr.mxu0 0.0
    %673 = vmatpush1.xpose.msra.mxu0 0.0
    %674 = vmatprep.subr.mxu0 0.0
    %675 = vmatpush1.xpose.msra.mxu0 0.0
    %676 = vmatprep.subr.mxu0 0.0
    %677 = vmatpush1.xpose.msra.mxu0 0.0
    %678 = vmatprep.subr.mxu0 0.0
    %679 = vmatpush1.xpose.msra.mxu0 0.0
    %680 = vmatprep.subr.mxu0 0.0
    %681 = vmatpush1.xpose.msra.mxu0 0.0
    %682 = vmatprep.subr.mxu0 0.0
    %683 = vmatpush1.xpose.msra.mxu0 0.0
    %684 = vmatprep.subr.mxu0 0.0
    %685 = vmatpush1.xpose.msra.mxu0 0.0
    %686 = vmatprep.subr.mxu0 0.0
    %687 = vmatpush1.xpose.msra.mxu0 %v654
    %688 = vmatprep.subr.mxu0 0.0
    %689 = vmatpush2.xpose.msra.mxu0 0.0
    %690 = vmatprep.subr.mxu0 0.0
    %691 = vmatpush2.xpose.msra.mxu0 0.0
    %692 = vmatprep.subr.mxu0 0.0
    %693 = vmatpush2.xpose.msra.mxu0 0.0
    %694 = vmatprep.subr.mxu0 0.0
    %695 = vmatpush2.xpose.msra.mxu0 0.0
    %696 = vmatprep.subr.mxu0 0.0
    %697 = vmatpush2.xpose.msra.mxu0 0.0
    %698 = vmatprep.subr.mxu0 0.0
    %699 = vmatpush2.xpose.msra.mxu0 0.0
    %700 = vmatprep.subr.mxu0 0.0
    %701 = vmatpush2.xpose.msra.mxu0 0.0
    %702 = vmatprep.subr.mxu0 0.0
    %703 = vmatpush2.xpose.msra.mxu0 0.0
    %704 = vmatprep.subr.mxu0 0.0
    %705 = vmatpush2.xpose.msra.mxu0 0.0
    %706 = vmatprep.subr.mxu0 0.0
    %707 = vmatpush2.xpose.msra.mxu0 0.0
    %708 = vmatprep.subr.mxu0 0.0
    %709 = vmatpush2.xpose.msra.mxu0 0.0
    %710 = vmatprep.subr.mxu0 0.0
    %711 = vmatpush2.xpose.msra.mxu0 0.0
    %712 = vmatprep.subr.mxu0 0.0
    %713 = vmatpush2.xpose.msra.mxu0 0.0
    %714 = vmatprep.subr.mxu0 0.0
    %715 = vmatpush2.xpose.msra.mxu0 0.0
    %716 = vmatprep.subr.mxu0 0.0
    %717 = vmatpush2.xpose.msra.mxu0 0.0
    %718 = vmatprep.subr.mxu0 0.0
    %719 = vmatpush2.xpose.msra.mxu0 0.0
    %720 = vmatprep.mubr.f32.mxu0 0.0
    %721 = vmatmul.mubr.f32.gmra.mxu0 %v221
    %v722 = vpop.f32.mrf.mxu0
    %v723 = vadd.f32 0.0, %v722
    %v724 = vpop.f32.mrf.mxu0
    %725 = vdwg.mxu0
    %v726 = vsel %vm296, %v723, -inf
    %727 = vmax.xlane.f32.xlu0 %v726
    %v728 = vpop.xlane.xlu0 %727
    %v729 = vsub.f32 %v723, %v728
    %v730 = vmul.f32 %v729, 1.442695
    %v731 = vpow.pop %v730
    %v732 = vsel %vm296, %v731, 0.0
    %733 = vadd.xlane.f32.xlu0 %v732
    %v734 = vpop.xlane.xlu0 %733
    %v735 = vrcp.pop %v734
    %v736 = vmul.f32 %v731, %v735
    %v737 = vsel %vm296, %v736, 0.0
    %v738 = vrot.slane %v737, 4
    %v739 = vadd.f32 %v737, %v738
    %v740 = vrot.slane %v739, 2
    %v741 = vadd.f32 %v739, %v740
    %v742 = vrot.slane %v741, 1
    %v743 = vadd.f32 %v741, %v742
    %v744 = vmul.f32 %v743, %v315
    %v745 = vmax.f32 %v744, 1e-30
    %v746 = vlog2.pop %v745
    %v747 = vmul.f32 %v746, 0.6931472
    %v748 = vmul.f32 %v744, %v747
    %v749 = vsel %vm296, %v748, 0.0
    %750 = vadd.xlane.f32.xlu0 %v749
    %v751 = vpop.xlane.xlu0 %750
    %v752 = vsub.f32 0.0, %v751
    %v754 = vsel %vm296, %v744, 0
    %756 = vmatprep.subr.mxu0 0.0
    %757 = vmatpush1.msra.mxu0 0.0
    %758 = vmatprep.subr.mxu0 0.0
    %759 = vmatpush1.msra.mxu0 0.0
    %760 = vmatprep.subr.mxu0 0.0
    %761 = vmatpush1.msra.mxu0 0.0
    %762 = vmatprep.subr.mxu0 0.0
    %763 = vmatpush1.msra.mxu0 0.0
    %764 = vmatprep.subr.mxu0 0.0
    %765 = vmatpush1.msra.mxu0 0.0
    %766 = vmatprep.subr.mxu0 0.0
    %767 = vmatpush1.msra.mxu0 0.0
    %768 = vmatprep.subr.mxu0 0.0
    %769 = vmatpush1.msra.mxu0 0.0
    %770 = vmatprep.subr.mxu0 0.0
    %771 = vmatpush1.msra.mxu0 0.0
    %772 = vmatprep.subr.mxu0 0.0
    %773 = vmatpush1.msra.mxu0 0.0
    %774 = vmatprep.subr.mxu0 0.0
    %775 = vmatpush1.msra.mxu0 0.0
    %776 = vmatprep.subr.mxu0 0.0
    %777 = vmatpush1.msra.mxu0 0.0
    %778 = vmatprep.subr.mxu0 0.0
    %779 = vmatpush1.msra.mxu0 0.0
    %780 = vmatprep.subr.mxu0 0.0
    %781 = vmatpush1.msra.mxu0 0.0
    %782 = vmatprep.subr.mxu0 0.0
    %783 = vmatpush1.msra.mxu0 0.0
    %784 = vmatprep.subr.mxu0 0.0
    %785 = vmatpush1.msra.mxu0 0.0
    %786 = vmatprep.subr.mxu0 0.0
    %787 = vmatpush1.msra.mxu0 %v330
    %788 = vmatprep.subr.mxu0 0.0
    %789 = vmatpush2.msra.mxu0 0.0
    %790 = vmatprep.subr.mxu0 0.0
    %791 = vmatpush2.msra.mxu0 0.0
    %792 = vmatprep.subr.mxu0 0.0
    %793 = vmatpush2.msra.mxu0 0.0
    %794 = vmatprep.subr.mxu0 0.0
    %795 = vmatpush2.msra.mxu0 0.0
    %796 = vmatprep.subr.mxu0 0.0
    %797 = vmatpush2.msra.mxu0 0.0
    %798 = vmatprep.subr.mxu0 0.0
    %799 = vmatpush2.msra.mxu0 0.0
    %800 = vmatprep.subr.mxu0 0.0
    %801 = vmatpush2.msra.mxu0 0.0
    %802 = vmatprep.subr.mxu0 0.0
    %803 = vmatpush2.msra.mxu0 0.0
    %804 = vmatprep.subr.mxu0 0.0
    %805 = vmatpush2.msra.mxu0 0.0
    %806 = vmatprep.subr.mxu0 0.0
    %807 = vmatpush2.msra.mxu0 0.0
    %808 = vmatprep.subr.mxu0 0.0
    %809 = vmatpush2.msra.mxu0 0.0
    %810 = vmatprep.subr.mxu0 0.0
    %811 = vmatpush2.msra.mxu0 0.0
    %812 = vmatprep.subr.mxu0 0.0
    %813 = vmatpush2.msra.mxu0 0.0
    %814 = vmatprep.subr.mxu0 0.0
    %815 = vmatpush2.msra.mxu0 0.0
    %816 = vmatprep.subr.mxu0 0.0
    %817 = vmatpush2.msra.mxu0 0.0
    %818 = vmatprep.subr.mxu0 0.0
    %819 = vmatpush2.msra.mxu0 0.0
    %820 = vmatprep.mubr.f32.mxu0 0.0
    %821 = vmatmul.mubr.f32.gmra.mxu0 %v754
    %v822 = vpop.f32.mrf.mxu0
    %v823 = vadd.f32 %v57, %v822
    %v824 = vpop.f32.mrf.mxu0
    %825 = vdwg.mxu0
    %v826 = vtanh.pop %v823
    %v828 = vsel %vm61, %v826, 0
    %830 = vmatprep.subr.mxu0 0.0
    %831 = vmatpush1.msra.mxu0 0.0
    %832 = vmatprep.subr.mxu0 0.0
    %833 = vmatpush1.msra.mxu0 0.0
    %834 = vmatprep.subr.mxu0 0.0
    %835 = vmatpush1.msra.mxu0 0.0
    %836 = vmatprep.subr.mxu0 0.0
    %837 = vmatpush1.msra.mxu0 0.0
    %838 = vmatprep.subr.mxu0 0.0
    %839 = vmatpush1.msra.mxu0 0.0
    %840 = vmatprep.subr.mxu0 0.0
    %841 = vmatpush1.msra.mxu0 0.0
    %842 = vmatprep.subr.mxu0 0.0
    %843 = vmatpush1.msra.mxu0 0.0
    %844 = vmatprep.subr.mxu0 0.0
    %845 = vmatpush1.msra.mxu0 0.0
    %846 = vmatprep.subr.mxu0 0.0
    %847 = vmatpush1.msra.mxu0 0.0
    %848 = vmatprep.subr.mxu0 0.0
    %849 = vmatpush1.msra.mxu0 0.0
    %850 = vmatprep.subr.mxu0 0.0
    %851 = vmatpush1.msra.mxu0 0.0
    %852 = vmatprep.subr.mxu0 0.0
    %853 = vmatpush1.msra.mxu0 0.0
    %854 = vmatprep.subr.mxu0 0.0
    %855 = vmatpush1.msra.mxu0 0.0
    %856 = vmatprep.subr.mxu0 0.0
    %857 = vmatpush1.msra.mxu0 0.0
    %858 = vmatprep.subr.mxu0 0.0
    %859 = vmatpush1.msra.mxu0 %v408
    %860 = vmatprep.subr.mxu0 0.0
    %861 = vmatpush1.msra.mxu0 %v406
    %862 = vmatprep.subr.mxu0 0.0
    %863 = vmatpush2.msra.mxu0 0.0
    %864 = vmatprep.subr.mxu0 0.0
    %865 = vmatpush2.msra.mxu0 0.0
    %866 = vmatprep.subr.mxu0 0.0
    %867 = vmatpush2.msra.mxu0 0.0
    %868 = vmatprep.subr.mxu0 0.0
    %869 = vmatpush2.msra.mxu0 0.0
    %870 = vmatprep.subr.mxu0 0.0
    %871 = vmatpush2.msra.mxu0 0.0
    %872 = vmatprep.subr.mxu0 0.0
    %873 = vmatpush2.msra.mxu0 0.0
    %874 = vmatprep.subr.mxu0 0.0
    %875 = vmatpush2.msra.mxu0 0.0
    %876 = vmatprep.subr.mxu0 0.0
    %877 = vmatpush2.msra.mxu0 0.0
    %878 = vmatprep.subr.mxu0 0.0
    %879 = vmatpush2.msra.mxu0 0.0
    %880 = vmatprep.subr.mxu0 0.0
    %881 = vmatpush2.msra.mxu0 0.0
    %882 = vmatprep.subr.mxu0 0.0
    %883 = vmatpush2.msra.mxu0 0.0
    %884 = vmatprep.subr.mxu0 0.0
    %885 = vmatpush2.msra.mxu0 0.0
    %886 = vmatprep.subr.mxu0 0.0
    %887 = vmatpush2.msra.mxu0 0.0
    %888 = vmatprep.subr.mxu0 0.0
    %889 = vmatpush2.msra.mxu0 0.0
    %890 = vmatprep.subr.mxu0 0.0
    %891 = vmatpush2.msra.mxu0 0.0
    %892 = vmatprep.subr.mxu0 0.0
    %893 = vmatpush2.msra.mxu0 0.0
    %894 = vmatprep.mubr.f32.mxu0 0.0
    %895 = vmatmul.mubr.f32.gmra.mxu0 %v828
    %v896 = vpop.f32.mrf.mxu0
    %v897 = vadd.f32 %v58, %v896
    %v898 = vpop.f32.mrf.mxu0
    %899 = vdwg.mxu0
    %v900 = vtanh.pop %v897
    %v902 = vsel %vm141, %v900, 0
    %904 = vmatprep.subr.mxu0 0.0
    %905 = vmatpush1.msra.mxu0 0.0
    %906 = vmatprep.subr.mxu0 0.0
    %907 = vmatpush1.msra.mxu0 0.0
    %908 = vmatprep.subr.mxu0 0.0
    %909 = vmatpush1.msra.mxu0 0.0
    %910 = vmatprep.subr.mxu0 0.0
    %911 = vmatpush1.msra.mxu0 0.0
    %912 = vmatprep.subr.mxu0 0.0
    %913 = vmatpush1.msra.mxu0 0.0
    %914 = vmatprep.subr.mxu0 0.0
    %915 = vmatpush1.msra.mxu0 0.0
    %916 = vmatprep.subr.mxu0 0.0
    %917 = vmatpush1.msra.mxu0 0.0
    %918 = vmatprep.subr.mxu0 0.0
    %919 = vmatpush1.msra.mxu0 0.0
    %920 = vmatprep.subr.mxu0 0.0
    %921 = vmatpush1.msra.mxu0 0.0
    %922 = vmatprep.subr.mxu0 0.0
    %923 = vmatpush1.msra.mxu0 0.0
    %924 = vmatprep.subr.mxu0 0.0
    %925 = vmatpush1.msra.mxu0 0.0
    %926 = vmatprep.subr.mxu0 0.0
    %927 = vmatpush1.msra.mxu0 0.0
    %928 = vmatprep.subr.mxu0 0.0
    %929 = vmatpush1.msra.mxu0 0.0
    %930 = vmatprep.subr.mxu0 0.0
    %931 = vmatpush1.msra.mxu0 0.0
    %932 = vmatprep.subr.mxu0 0.0
    %933 = vmatpush1.msra.mxu0 0.0
    %934 = vmatprep.subr.mxu0 0.0
    %935 = vmatpush1.msra.mxu0 %v486
    %936 = vmatprep.subr.mxu0 0.0
    %937 = vmatpush2.msra.mxu0 0.0
    %938 = vmatprep.subr.mxu0 0.0
    %939 = vmatpush2.msra.mxu0 0.0
    %940 = vmatprep.subr.mxu0 0.0
    %941 = vmatpush2.msra.mxu0 0.0
    %942 = vmatprep.subr.mxu0 0.0
    %943 = vmatpush2.msra.mxu0 0.0
    %944 = vmatprep.subr.mxu0 0.0
    %945 = vmatpush2.msra.mxu0 0.0
    %946 = vmatprep.subr.mxu0 0.0
    %947 = vmatpush2.msra.mxu0 0.0
    %948 = vmatprep.subr.mxu0 0.0
    %949 = vmatpush2.msra.mxu0 0.0
    %950 = vmatprep.subr.mxu0 0.0
    %951 = vmatpush2.msra.mxu0 0.0
    %952 = vmatprep.subr.mxu0 0.0
    %953 = vmatpush2.msra.mxu0 0.0
    %954 = vmatprep.subr.mxu0 0.0
    %955 = vmatpush2.msra.mxu0 0.0
    %956 = vmatprep.subr.mxu0 0.0
    %957 = vmatpush2.msra.mxu0 0.0
    %958 = vmatprep.subr.mxu0 0.0
    %959 = vmatpush2.msra.mxu0 0.0
    %960 = vmatprep.subr.mxu0 0.0
    %961 = vmatpush2.msra.mxu0 0.0
    %962 = vmatprep.subr.mxu0 0.0
    %963 = vmatpush2.msra.mxu0 0.0
    %964 = vmatprep.subr.mxu0 0.0
    %965 = vmatpush2.msra.mxu0 0.0
    %966 = vmatprep.subr.mxu0 0.0
    %967 = vmatpush2.msra.mxu0 0.0
    %968 = vmatprep.mubr.f32.mxu0 0.0
    %969 = vmatmul.mubr.f32.gmra.mxu0 %v902
    %v970 = vpop.f32.mrf.mxu0
    %v971 = vadd.f32 %v59, %v970
    %v972 = vpop.f32.mrf.mxu0
    %973 = vdwg.mxu0
    %v974 = vtanh.pop %v971
    %v976 = vsel %vm296, %v974, 0
    %978 = vmatprep.subr.mxu0 0.0
    %979 = vmatpush1.msra.mxu0 0.0
    %980 = vmatprep.subr.mxu0 0.0
    %981 = vmatpush1.msra.mxu0 0.0
    %982 = vmatprep.subr.mxu0 0.0
    %983 = vmatpush1.msra.mxu0 0.0
    %984 = vmatprep.subr.mxu0 0.0
    %985 = vmatpush1.msra.mxu0 0.0
    %986 = vmatprep.subr.mxu0 0.0
    %987 = vmatpush1.msra.mxu0 0.0
    %988 = vmatprep.subr.mxu0 0.0
    %989 = vmatpush1.msra.mxu0 0.0
    %990 = vmatprep.subr.mxu0 0.0
    %991 = vmatpush1.msra.mxu0 0.0
    %992 = vmatprep.subr.mxu0 0.0
    %993 = vmatpush1.msra.mxu0 0.0
    %994 = vmatprep.subr.mxu0 0.0
    %995 = vmatpush1.msra.mxu0 0.0
    %996 = vmatprep.subr.mxu0 0.0
    %997 = vmatpush1.msra.mxu0 0.0
    %998 = vmatprep.subr.mxu0 0.0
    %999 = vmatpush1.msra.mxu0 0.0
    %1000 = vmatprep.subr.mxu0 0.0
    %1001 = vmatpush1.msra.mxu0 0.0
    %1002 = vmatprep.subr.mxu0 0.0
    %1003 = vmatpush1.msra.mxu0 0.0
    %1004 = vmatprep.subr.mxu0 0.0
    %1005 = vmatpush1.msra.mxu0 0.0
    %1006 = vmatprep.subr.mxu0 0.0
    %1007 = vmatpush1.msra.mxu0 0.0
    %1008 = vmatprep.subr.mxu0 0.0
    %1009 = vmatpush1.msra.mxu0 %v567
    %1010 = vmatprep.subr.mxu0 0.0
    %1011 = vmatpush2.msra.mxu0 0.0
    %1012 = vmatprep.subr.mxu0 0.0
    %1013 = vmatpush2.msra.mxu0 0.0
    %1014 = vmatprep.subr.mxu0 0.0
    %1015 = vmatpush2.msra.mxu0 0.0
    %1016 = vmatprep.subr.mxu0 0.0
    %1017 = vmatpush2.msra.mxu0 0.0
    %1018 = vmatprep.subr.mxu0 0.0
    %1019 = vmatpush2.msra.mxu0 0.0
    %1020 = vmatprep.subr.mxu0 0.0
    %1021 = vmatpush2.msra.mxu0 0.0
    %1022 = vmatprep.subr.mxu0 0.0
    %1023 = vmatpush2.msra.mxu0 0.0
    %1024 = vmatprep.subr.mxu0 0.0
    %1025 = vmatpush2.msra.mxu0 0.0
    %1026 = vmatprep.subr.mxu0 0.0
    %1027 = vmatpush2.msra.mxu0 0.0
    %1028 = vmatprep.subr.mxu0 0.0
    %1029 = vmatpush2.msra.mxu0 0.0
    %1030 = vmatprep.subr.mxu0 0.0
    %1031 = vmatpush2.msra.mxu0 0.0
    %1032 = vmatprep.subr.mxu0 0.0
    %1033 = vmatpush2.msra.mxu0 0.0
    %1034 = vmatprep.subr.mxu0 0.0
    %1035 = vmatpush2.msra.mxu0 0.0
    %1036 = vmatprep.subr.mxu0 0.0
    %1037 = vmatpush2.msra.mxu0 0.0
    %1038 = vmatprep.subr.mxu0 0.0
    %1039 = vmatpush2.msra.mxu0 0.0
    %1040 = vmatprep.subr.mxu0 0.0
    %1041 = vmatpush2.msra.mxu0 0.0
    %1042 = vmatprep.mubr.f32.mxu0 0.0
    %1043 = vmatmul.mubr.f32.gmra.mxu0 %v976
    %v1044 = vpop.f32.mrf.mxu0
    %v1045 = vadd.f32 %v60, %v1044
    %v1046 = vpop.f32.mrf.mxu0
    %1047 = vdwg.mxu0
    %s1048 = sld [smem:[#allocation7 + $0x1]]
    %v1049 = vstv %s1048
    %v1050 = vsub.f32 %v1045, %v1049
    %v1051 = vmul.f32 %v1050, %v1050
    %v1052 = vadd.f32 %v642, %v1051
    %1053 = vst.msk [vmem:[%s3 + $0x1] sm:$0x1] %vm643, %v744
    %1055 = vset.pattern.permute.xlu0 0
    %1056 = vperm.xlu0 %1055, %v1045
    %v1057 = vpop.permute.xlu0 %1056
    %1059 = vst.msk [vmem:[%s3 + $0x3] sm:$0x1] %vm643, %v1057
    %1060 = vst.msk [vmem:[%s3 + $0x5] sm:$0x1] %vm643, %v752
    %v1061 = vmul.f32 %v1052, 0.5
    %s1063 = vtos %v1061
    %v1064 = vstv %s1063
    %vm1066 = vcmask 25600
    %1067 = vst.msk [vmem:[%s3 + $0x6] sm:$0x3] %vm1066, %v1064
    // Predicated region
    $region26: #{forward.1} parent=1 // pred_check
      _
    $region27: #{forward.1} parent=1 // pred_check_branch
      %1069 = sbr.rel (0) target = $region29
    $region28: #{forward.1} parent=1 // pred_region
      _
    $region29: #{forward.1} parent=1 // pred_fallthru
      _
    // Predicated region
    $region30: #{forward.1} parent=1 // pred_check
      _
    $region31: #{forward.1} parent=1 // pred_check_branch
      %1071 = sbr.rel (0) target = $region33
    $region32: #{forward.1} parent=1 // pred_region
      _
    $region33: #{forward.1} parent=1 // pred_fallthru
      _
    %1072 = vsyncpa [#allocation3], 1
    %1073 = vsyncpa [#allocation6], 1
    %1074 = vsyncpa [#allocation4], 1

</llo_original>
